<compile_context>
chip_gen: v5e
topology: v5e:2x2
jax: 0.10.0
libtpu: 0.0.40
codegen_flags: <defaults>
</compile_context>

<pallas_src>
import functools

import jax
import jax.numpy as jnp
from jax import lax
from jax.experimental import pallas as pl
from jax.experimental.pallas import tpu as pltpu


def stock_lstm_kernel(x_ref, w_ref, v_ref, out_ref, *,
                      seq_len, input_size, hidden, out_size):
    """Full forward pass in VMEM.

    x_ref  : (T*Bp, I)  flattened time-major input, batch padded to Bp=8
                        (row t*Bp + b holds timestep t, padded-batch row b)
    w_ref  : packed weight slab, lanes = 4H, rows =
               [0:H]        wih   (H, 4H)   fused input->hidden, gate order [i|f|g|o]
               [H:2H]       whh   (H, 4H)   fused hidden->hidden
               [2H:2H+I]    w1^T  (I, H)    linear_1 weight (lanes 0:H live)
               [2H+I: ...]  fc    (1, H) row if O == 1 (VPU-reduce path) else (H, O)
    v_ref  : (8, 4H) packed vector slab:
               row 0 lanes 0:H  -> b1
               row 1 lanes 0:4H -> b_ih + b_hh
               row 2 lanes 0:O  -> bfc
    out_ref: (Bp, O)   fc(lstm_out[:, -1, :]); wrapper keeps rows [:B].
    """
    T, I, H, O = seq_len, input_size, hidden, out_size
    G = 4 * H
    Bp = out_ref.shape[0]

    # Trace-time consistency checks (VMEM has no runtime bounds check).
    assert x_ref.shape[0] == T * Bp, (x_ref.shape, T, Bp)
    assert x_ref.shape[1] == I
    assert w_ref.shape[1] == G and v_ref.shape[1] == G

    # Static row offsets into the packed weight slab.
    R_WIH, R_WHH, R_W1, R_WFC = 0, H, 2 * H, 2 * H + I

    b1 = v_ref[0:1, 0:H]                                    # (1, H)
    bias = v_ref[1:2, 0:G]                                   # (1, 4H) = b_ih + b_hh
    bfc = v_ref[2:3, 0:O]                                    # (1, O)

    # ---- Phase 1 (hoisted out of the recurrence): linear_1 + ReLU + input projection
    # for ALL timesteps at once.
    x = x_ref[...]                                           # (T*Bp, I)
    if I == 1:
        w1_row = w_ref[R_W1:R_W1 + 1, 0:H]                   # (1, H)
        pre = jnp.maximum(x * w1_row + b1, 0.0)              # VPU broadcast, K=1 off MXU
    else:
        w1 = w_ref[R_W1:R_W1 + I, 0:H]                       # (I, H)
        pre = jnp.maximum(
            jnp.dot(x, w1, preferred_element_type=jnp.float32) + b1, 0.0)
    wih = w_ref[R_WIH:R_WIH + H, :]                          # (H, 4H)
    # One large lane-dense matmul (N = 4H = 128); bias added once per row, not per step.
    xproj = jnp.dot(pre, wih, preferred_element_type=jnp.float32) + bias   # (T*Bp, 4H)

    whh = w_ref[R_WHH:R_WHH + H, :]                          # (H, 4H), VMEM-resident
    # TODO(synk): keep whh resident in the MXU across the recurrence via
    # pltpu.matmul_push_rhs / matmul_acc_lhs / matmul_pop once the accumulator-reset
    # semantics are pinned down per generation (MRF on v5e/v6e vs MRB on v7x);
    # jnp.dot re-pushes this tiny (H, 4H) RHS every step.

    # Single-tanh activation bookkeeping: sigmoid(x) = 0.5 * tanh(0.5 * x) + 0.5.
    # Constants hoisted out of the loop (JAX does not CSE broadcast_in_dim).
    lane = lax.broadcasted_iota(jnp.int32, (Bp, G), 1)
    g_mask = (lane >= 2 * H) & (lane < 3 * H)                # tanh lanes (gate g)
    pre_scale = jnp.where(g_mask, 1.0, 0.5)
    post_scale = pre_scale                                    # 1.0 on g lanes, 0.5 elsewhere
    post_off = jnp.where(g_mask, 0.0, 0.5)

    h = jnp.zeros((Bp, H), jnp.float32)
    c = jnp.zeros((Bp, H), jnp.float32)

    # ---- Phase 2: recurrence, fully unrolled (T small & static) so the LLO scheduler
    # can overlap EUP/VPU work of step t with the MXU push of step t+1.  Bp == 8 keeps
    # every per-step xproj slice an aligned (8, 128) tile (no partial-sublane relayout).
    for t in range(T):
        gates = xproj[t * Bp:(t + 1) * Bp, :] + jnp.dot(
            h, whh, preferred_element_type=jnp.float32)      # (Bp, 4H)
        # ONE EUP pass over the whole slab (was tanh AND sigmoid before).
        tg = jnp.tanh(gates * pre_scale)
        act = tg * post_scale + post_off                      # [sig(i)|sig(f)|tanh(g)|sig(o)]
        i_g = act[:, 0:H]
        f_g = act[:, H:2 * H]
        g_g = act[:, 2 * H:3 * H]
        o_g = act[:, 3 * H:4 * H]
        c = f_g * c + i_g * g_g
        h = o_g * jnp.tanh(c)

    # ---- Phase 3: final fc.
    # TODO(synk): nn.Dropout is identity in eval/inference mode; no stochastic mask here.
    if O == 1:
        wfc_row = w_ref[R_WFC:R_WFC + 1, 0:H]                 # (1, H)
        out_ref[...] = jnp.sum(h * wfc_row, axis=-1, keepdims=True) + bfc
    else:
        wfc = w_ref[R_WFC:R_WFC + H, 0:O]                     # (H, O)
        out_ref[...] = (jnp.dot(h, wfc, preferred_element_type=jnp.float32) + bfc)


def stock_lstm_forward(x, params):
    """x: (B, T, I) float32  ->  (B,) float32 (matches predictions[:, -1])."""
    B, T, I = x.shape
    H = params["w1"].shape[0]
    O = params["wfc"].shape[0]
    G = 4 * H
    Bp = max(8, ((B + 7) // 8) * 8)   # sublane-aligned padded batch

    # Time-major, batch padded to Bp (padded rows are zeros -> finite garbage, dropped).
    x_tm = jnp.transpose(x, (1, 0, 2)).astype(jnp.float32)            # (T, B, I)
    x_tm = jnp.pad(x_tm, ((0, 0), (0, Bp - B), (0, 0))).reshape(T * Bp, I)

    def pad_lanes(a, width):
        a = jnp.asarray(a, jnp.float32)
        return jnp.pad(a, ((0, 0), (0, width - a.shape[1])))

    # PyTorch LSTM weights are (4H, H), gate order [i, f, g, o]; transpose -> (H, 4H).
    wih = params["w_ih"].T.astype(jnp.float32)                        # (H, 4H)
    whh = params["w_hh"].T.astype(jnp.float32)                        # (H, 4H)
    w1 = pad_lanes(params["w1"].T, G)                                 # (I, 4H), lanes 0:H live
    if O == 1:
        wfc = pad_lanes(params["wfc"].reshape(1, H), G)               # (1, 4H) row (VPU reduce)
    else:
        wfc = pad_lanes(params["wfc"].T, G)                           # (H, 4H), lanes 0:O live
    w_slab = jnp.concatenate([wih, whh, w1, wfc], axis=0)             # packed matrix slab

    v_slab = jnp.zeros((8, G), jnp.float32)
    v_slab = v_slab.at[0, :H].set(params["b1"].astype(jnp.float32))
    v_slab = v_slab.at[1, :G].set((params["b_ih"] + params["b_hh"]).astype(jnp.float32))
    v_slab = v_slab.at[2, :O].set(params["bfc"].astype(jnp.float32))

    vmem = pl.BlockSpec(memory_space=pltpu.MemorySpace.VMEM)
    out = pl.pallas_call(
        functools.partial(stock_lstm_kernel, seq_len=T, input_size=I,
                          hidden=H, out_size=O),
        out_shape=jax.ShapeDtypeStruct((Bp, O), jnp.float32),
        in_specs=[vmem, vmem, vmem],
        out_specs=vmem,
        compiler_params=pltpu.CompilerParams(vmem_limit_bytes=32 * 1024 * 1024),
    )(x_tm, w_slab, v_slab)
    # TODO(synk): for large batch on v7x, add a batch grid with
    # dimension_semantics=("parallel",) to occupy the second TensorCore.
    # predictions[:, -1], keeping only real batch rows.
    return out[:B, -1]


def reference_forward(x, p):
    """Pure-JAX reference mirroring the PyTorch module in eval mode."""
    H = p["w1"].shape[0]
    pre = jax.nn.relu(x @ p["w1"].T + p["b1"])                 # (B, T, H)
    B, T, _ = pre.shape

    def step(carry, xt):
        h, c = carry
        gates = xt @ p["w_ih"].T + p["b_ih"] + h @ p["w_hh"].T + p["b_hh"]
        i, f, g, o = jnp.split(gates, 4, axis=-1)
        i = jax.nn.sigmoid(i)
        f = jax.nn.sigmoid(f)
        g = jnp.tanh(g)
        o = jax.nn.sigmoid(o)
        c = f * c + i * g
        h = o * jnp.tanh(c)
        return (h, c), h

    h0 = jnp.zeros((B, H), jnp.float32)
    c0 = jnp.zeros((B, H), jnp.float32)
    (h_last, _), _ = lax.scan(step, (h0, c0), jnp.transpose(pre, (1, 0, 2)))
    out = h_last @ p["wfc"].T + p["bfc"]                        # (B, O)
    return out[:, -1]


def init_params(key, input_size=1, hidden=32, output_size=1):
    ks = jax.random.split(key, 8)
    scale = 0.1
    return {
        "w1":   scale * jax.random.normal(ks[0], (hidden, input_size), jnp.float32),
        "b1":   scale * jax.random.normal(ks[1], (hidden,), jnp.float32),
        "w_ih": scale * jax.random.normal(ks[2], (4 * hidden, hidden), jnp.float32),
        "w_hh": scale * jax.random.normal(ks[3], (4 * hidden, hidden), jnp.float32),
        "b_ih": scale * jax.random.normal(ks[4], (4 * hidden,), jnp.float32),
        "b_hh": scale * jax.random.normal(ks[5], (4 * hidden,), jnp.float32),
        "wfc":  scale * jax.random.normal(ks[6], (output_size, hidden), jnp.float32),
        "bfc":  scale * jax.random.normal(ks[7], (output_size,), jnp.float32),
    }


if __name__ == "__main__":
    key = jax.random.PRNGKey(0)
    k_param, k_x = jax.random.split(key)

    B, T, I, H, O = 2, 8, 1, 32, 1
    params = init_params(k_param, input_size=I, hidden=H, output_size=O)
    x = jax.random.normal(k_x, (B, T, I), jnp.float32)

    out = stock_lstm_forward(x, params)
    out = jax.block_until_ready(out)

    ref = jax.block_until_ready(reference_forward(x, params))
    assert out.shape == (B,), out.shape
    assert jnp.allclose(out, ref, atol=1e-4, rtol=1e-4), (out, ref)

    print("KERNEL_OK")
</pallas_src>

<mosaic_0001>
module attributes {stable_mosaic.version = 11 : i64} {
  func.func @stock_lstm_kernel(%arg0: memref<64x1xf32, #tpu.memory_space<vmem>>, %arg1: memref<66x128xf32, #tpu.memory_space<vmem>>, %arg2: memref<8x128xf32, #tpu.memory_space<vmem>>, %arg3: memref<8x1xf32, #tpu.memory_space<vmem>>) attributes {dimension_semantics = [], scalar_prefetch = 0 : i64, scratch_operands = 0 : i64, tpu.core_type = #tpu.core_type<tc>} {
    %c0 = arith.constant 0 : index
    %c0_0 = arith.constant 0 : index
    %0 = vector.load %arg2[%c0, %c0_0] : memref<8x128xf32, #tpu.memory_space<vmem>>, vector<1x32xf32>
    %c1 = arith.constant 1 : index
    %c0_1 = arith.constant 0 : index
    %1 = vector.load %arg2[%c1, %c0_1] : memref<8x128xf32, #tpu.memory_space<vmem>>, vector<1x128xf32>
    %c2 = arith.constant 2 : index
    %c0_2 = arith.constant 0 : index
    %2 = vector.load %arg2[%c2, %c0_2] : memref<8x128xf32, #tpu.memory_space<vmem>>, vector<1x1xf32>
    %c0_3 = arith.constant 0 : index
    %c0_4 = arith.constant 0 : index
    %3 = vector.load %arg0[%c0_3, %c0_4] : memref<64x1xf32, #tpu.memory_space<vmem>>, vector<64x1xf32>
    %c64 = arith.constant 64 : index
    %c0_5 = arith.constant 0 : index
    %4 = vector.load %arg1[%c64, %c0_5] : memref<66x128xf32, #tpu.memory_space<vmem>>, vector<1x32xf32>
    %5 = vector.broadcast %3 : vector<64x1xf32> to vector<64x32xf32>
    %6 = vector.broadcast %4 : vector<1x32xf32> to vector<64x32xf32>
    %7 = arith.mulf %5, %6 : vector<64x32xf32>
    %8 = vector.broadcast %0 : vector<1x32xf32> to vector<64x32xf32>
    %9 = arith.addf %7, %8 : vector<64x32xf32>
    %cst = arith.constant 0.000000e+00 : f32
    %10 = vector.broadcast %cst : f32 to vector<64x32xf32>
    %11 = arith.maximumf %9, %10 : vector<64x32xf32>
    %c0_6 = arith.constant 0 : index
    %c0_7 = arith.constant 0 : index
    %12 = vector.load %arg1[%c0_6, %c0_7] : memref<66x128xf32, #tpu.memory_space<vmem>>, vector<32x128xf32>
    %cst_8 = arith.constant dense<0.000000e+00> : vector<64x128xf32>
    %13 = tpu.matmul %11, %12, %cst_8 {dimension_numbers = #tpu.dot_dimension_numbers<[1], [0], [0], [1], [0, 0, 1, 1], [], []>} : vector<64x32xf32>, vector<32x128xf32>, vector<64x128xf32> -> vector<64x128xf32>
    %14 = vector.broadcast %1 : vector<1x128xf32> to vector<64x128xf32>
    %15 = arith.addf %13, %14 : vector<64x128xf32>
    %c32 = arith.constant 32 : index
    %c0_9 = arith.constant 0 : index
    %16 = vector.load %arg1[%c32, %c0_9] : memref<66x128xf32, #tpu.memory_space<vmem>>, vector<32x128xf32>
    %17 = tpu.iota {dimensions = array<i32: 1>} : vector<8x128xi32>
    %c64_i32 = arith.constant 64 : i32
    %18 = vector.broadcast %c64_i32 : i32 to vector<8x128xi32>
    %19 = arith.cmpi sge, %17, %18 : vector<8x128xi32>
    %c96_i32 = arith.constant 96 : i32
    %20 = vector.broadcast %c96_i32 : i32 to vector<8x128xi32>
    %21 = arith.cmpi slt, %17, %20 : vector<8x128xi32>
    %22 = arith.andi %19, %21 : vector<8x128xi1>
    %cst_10 = arith.constant 1.000000e+00 : f32
    %cst_11 = arith.constant 5.000000e-01 : f32
    %23 = vector.broadcast %cst_10 : f32 to vector<8x128xf32>
    %24 = vector.broadcast %cst_11 : f32 to vector<8x128xf32>
    %25 = arith.select %22, %23, %24 : vector<8x128xi1>, vector<8x128xf32>
    %cst_12 = arith.constant 0.000000e+00 : f32
    %cst_13 = arith.constant 5.000000e-01 : f32
    %26 = vector.broadcast %cst_12 : f32 to vector<8x128xf32>
    %27 = vector.broadcast %cst_13 : f32 to vector<8x128xf32>
    %28 = arith.select %22, %26, %27 : vector<8x128xi1>, vector<8x128xf32>
    %cst_14 = arith.constant 0.000000e+00 : f32
    %29 = vector.broadcast %cst_14 : f32 to vector<8x32xf32>
    %cst_15 = arith.constant 0.000000e+00 : f32
    %30 = vector.broadcast %cst_15 : f32 to vector<8x32xf32>
    %31 = vector.extract_strided_slice %15 {offsets = [0, 0], sizes = [8, 128], strides = [1, 1]} : vector<64x128xf32> to vector<8x128xf32>
    %cst_16 = arith.constant dense<0.000000e+00> : vector<8x128xf32>
    %32 = tpu.matmul %29, %16, %cst_16 {dimension_numbers = #tpu.dot_dimension_numbers<[1], [0], [0], [1], [0, 0, 1, 1], [], []>} : vector<8x32xf32>, vector<32x128xf32>, vector<8x128xf32> -> vector<8x128xf32>
    %33 = arith.addf %31, %32 : vector<8x128xf32>
    %34 = arith.mulf %33, %25 : vector<8x128xf32>
    %35 = math.tanh %34 : vector<8x128xf32>
    %36 = arith.mulf %35, %25 : vector<8x128xf32>
    %37 = arith.addf %36, %28 : vector<8x128xf32>
    %38 = vector.extract_strided_slice %37 {offsets = [0, 0], sizes = [8, 32], strides = [1, 1]} : vector<8x128xf32> to vector<8x32xf32>
    %39 = vector.extract_strided_slice %37 {offsets = [0, 32], sizes = [8, 32], strides = [1, 1]} : vector<8x128xf32> to vector<8x32xf32>
    %40 = vector.extract_strided_slice %37 {offsets = [0, 64], sizes = [8, 32], strides = [1, 1]} : vector<8x128xf32> to vector<8x32xf32>
    %41 = vector.extract_strided_slice %37 {offsets = [0, 96], sizes = [8, 32], strides = [1, 1]} : vector<8x128xf32> to vector<8x32xf32>
    %42 = arith.mulf %39, %30 : vector<8x32xf32>
    %43 = arith.mulf %38, %40 : vector<8x32xf32>
    %44 = arith.addf %42, %43 : vector<8x32xf32>
    %45 = math.tanh %44 : vector<8x32xf32>
    %46 = arith.mulf %41, %45 : vector<8x32xf32>
    %47 = vector.extract_strided_slice %15 {offsets = [8, 0], sizes = [8, 128], strides = [1, 1]} : vector<64x128xf32> to vector<8x128xf32>
    %cst_17 = arith.constant dense<0.000000e+00> : vector<8x128xf32>
    %48 = tpu.matmul %46, %16, %cst_17 {dimension_numbers = #tpu.dot_dimension_numbers<[1], [0], [0], [1], [0, 0, 1, 1], [], []>} : vector<8x32xf32>, vector<32x128xf32>, vector<8x128xf32> -> vector<8x128xf32>
    %49 = arith.addf %47, %48 : vector<8x128xf32>
    %50 = arith.mulf %49, %25 : vector<8x128xf32>
    %51 = math.tanh %50 : vector<8x128xf32>
    %52 = arith.mulf %51, %25 : vector<8x128xf32>
    %53 = arith.addf %52, %28 : vector<8x128xf32>
    %54 = vector.extract_strided_slice %53 {offsets = [0, 0], sizes = [8, 32], strides = [1, 1]} : vector<8x128xf32> to vector<8x32xf32>
    %55 = vector.extract_strided_slice %53 {offsets = [0, 32], sizes = [8, 32], strides = [1, 1]} : vector<8x128xf32> to vector<8x32xf32>
    %56 = vector.extract_strided_slice %53 {offsets = [0, 64], sizes = [8, 32], strides = [1, 1]} : vector<8x128xf32> to vector<8x32xf32>
    %57 = vector.extract_strided_slice %53 {offsets = [0, 96], sizes = [8, 32], strides = [1, 1]} : vector<8x128xf32> to vector<8x32xf32>
    %58 = arith.mulf %55, %44 : vector<8x32xf32>
    %59 = arith.mulf %54, %56 : vector<8x32xf32>
    %60 = arith.addf %58, %59 : vector<8x32xf32>
    %61 = math.tanh %60 : vector<8x32xf32>
    %62 = arith.mulf %57, %61 : vector<8x32xf32>
    %63 = vector.extract_strided_slice %15 {offsets = [16, 0], sizes = [8, 128], strides = [1, 1]} : vector<64x128xf32> to vector<8x128xf32>
    %cst_18 = arith.constant dense<0.000000e+00> : vector<8x128xf32>
    %64 = tpu.matmul %62, %16, %cst_18 {dimension_numbers = #tpu.dot_dimension_numbers<[1], [0], [0], [1], [0, 0, 1, 1], [], []>} : vector<8x32xf32>, vector<32x128xf32>, vector<8x128xf32> -> vector<8x128xf32>
    %65 = arith.addf %63, %64 : vector<8x128xf32>
    %66 = arith.mulf %65, %25 : vector<8x128xf32>
    %67 = math.tanh %66 : vector<8x128xf32>
    %68 = arith.mulf %67, %25 : vector<8x128xf32>
    %69 = arith.addf %68, %28 : vector<8x128xf32>
    %70 = vector.extract_strided_slice %69 {offsets = [0, 0], sizes = [8, 32], strides = [1, 1]} : vector<8x128xf32> to vector<8x32xf32>
    %71 = vector.extract_strided_slice %69 {offsets = [0, 32], sizes = [8, 32], strides = [1, 1]} : vector<8x128xf32> to vector<8x32xf32>
    %72 = vector.extract_strided_slice %69 {offsets = [0, 64], sizes = [8, 32], strides = [1, 1]} : vector<8x128xf32> to vector<8x32xf32>
    %73 = vector.extract_strided_slice %69 {offsets = [0, 96], sizes = [8, 32], strides = [1, 1]} : vector<8x128xf32> to vector<8x32xf32>
    %74 = arith.mulf %71, %60 : vector<8x32xf32>
    %75 = arith.mulf %70, %72 : vector<8x32xf32>
    %76 = arith.addf %74, %75 : vector<8x32xf32>
    %77 = math.tanh %76 : vector<8x32xf32>
    %78 = arith.mulf %73, %77 : vector<8x32xf32>
    %79 = vector.extract_strided_slice %15 {offsets = [24, 0], sizes = [8, 128], strides = [1, 1]} : vector<64x128xf32> to vector<8x128xf32>
    %cst_19 = arith.constant dense<0.000000e+00> : vector<8x128xf32>
    %80 = tpu.matmul %78, %16, %cst_19 {dimension_numbers = #tpu.dot_dimension_numbers<[1], [0], [0], [1], [0, 0, 1, 1], [], []>} : vector<8x32xf32>, vector<32x128xf32>, vector<8x128xf32> -> vector<8x128xf32>
    %81 = arith.addf %79, %80 : vector<8x128xf32>
    %82 = arith.mulf %81, %25 : vector<8x128xf32>
    %83 = math.tanh %82 : vector<8x128xf32>
    %84 = arith.mulf %83, %25 : vector<8x128xf32>
    %85 = arith.addf %84, %28 : vector<8x128xf32>
    %86 = vector.extract_strided_slice %85 {offsets = [0, 0], sizes = [8, 32], strides = [1, 1]} : vector<8x128xf32> to vector<8x32xf32>
    %87 = vector.extract_strided_slice %85 {offsets = [0, 32], sizes = [8, 32], strides = [1, 1]} : vector<8x128xf32> to vector<8x32xf32>
    %88 = vector.extract_strided_slice %85 {offsets = [0, 64], sizes = [8, 32], strides = [1, 1]} : vector<8x128xf32> to vector<8x32xf32>
    %89 = vector.extract_strided_slice %85 {offsets = [0, 96], sizes = [8, 32], strides = [1, 1]} : vector<8x128xf32> to vector<8x32xf32>
    %90 = arith.mulf %87, %76 : vector<8x32xf32>
    %91 = arith.mulf %86, %88 : vector<8x32xf32>
    %92 = arith.addf %90, %91 : vector<8x32xf32>
    %93 = math.tanh %92 : vector<8x32xf32>
    %94 = arith.mulf %89, %93 : vector<8x32xf32>
    %95 = vector.extract_strided_slice %15 {offsets = [32, 0], sizes = [8, 128], strides = [1, 1]} : vector<64x128xf32> to vector<8x128xf32>
    %cst_20 = arith.constant dense<0.000000e+00> : vector<8x128xf32>
    %96 = tpu.matmul %94, %16, %cst_20 {dimension_numbers = #tpu.dot_dimension_numbers<[1], [0], [0], [1], [0, 0, 1, 1], [], []>} : vector<8x32xf32>, vector<32x128xf32>, vector<8x128xf32> -> vector<8x128xf32>
    %97 = arith.addf %95, %96 : vector<8x128xf32>
    %98 = arith.mulf %97, %25 : vector<8x128xf32>
    %99 = math.tanh %98 : vector<8x128xf32>
    %100 = arith.mulf %99, %25 : vector<8x128xf32>
    %101 = arith.addf %100, %28 : vector<8x128xf32>
    %102 = vector.extract_strided_slice %101 {offsets = [0, 0], sizes = [8, 32], strides = [1, 1]} : vector<8x128xf32> to vector<8x32xf32>
    %103 = vector.extract_strided_slice %101 {offsets = [0, 32], sizes = [8, 32], strides = [1, 1]} : vector<8x128xf32> to vector<8x32xf32>
    %104 = vector.extract_strided_slice %101 {offsets = [0, 64], sizes = [8, 32], strides = [1, 1]} : vector<8x128xf32> to vector<8x32xf32>
    %105 = vector.extract_strided_slice %101 {offsets = [0, 96], sizes = [8, 32], strides = [1, 1]} : vector<8x128xf32> to vector<8x32xf32>
    %106 = arith.mulf %103, %92 : vector<8x32xf32>
    %107 = arith.mulf %102, %104 : vector<8x32xf32>
    %108 = arith.addf %106, %107 : vector<8x32xf32>
    %109 = math.tanh %108 : vector<8x32xf32>
    %110 = arith.mulf %105, %109 : vector<8x32xf32>
    %111 = vector.extract_strided_slice %15 {offsets = [40, 0], sizes = [8, 128], strides = [1, 1]} : vector<64x128xf32> to vector<8x128xf32>
    %cst_21 = arith.constant dense<0.000000e+00> : vector<8x128xf32>
    %112 = tpu.matmul %110, %16, %cst_21 {dimension_numbers = #tpu.dot_dimension_numbers<[1], [0], [0], [1], [0, 0, 1, 1], [], []>} : vector<8x32xf32>, vector<32x128xf32>, vector<8x128xf32> -> vector<8x128xf32>
    %113 = arith.addf %111, %112 : vector<8x128xf32>
    %114 = arith.mulf %113, %25 : vector<8x128xf32>
    %115 = math.tanh %114 : vector<8x128xf32>
    %116 = arith.mulf %115, %25 : vector<8x128xf32>
    %117 = arith.addf %116, %28 : vector<8x128xf32>
    %118 = vector.extract_strided_slice %117 {offsets = [0, 0], sizes = [8, 32], strides = [1, 1]} : vector<8x128xf32> to vector<8x32xf32>
    %119 = vector.extract_strided_slice %117 {offsets = [0, 32], sizes = [8, 32], strides = [1, 1]} : vector<8x128xf32> to vector<8x32xf32>
    %120 = vector.extract_strided_slice %117 {offsets = [0, 64], sizes = [8, 32], strides = [1, 1]} : vector<8x128xf32> to vector<8x32xf32>
    %121 = vector.extract_strided_slice %117 {offsets = [0, 96], sizes = [8, 32], strides = [1, 1]} : vector<8x128xf32> to vector<8x32xf32>
    %122 = arith.mulf %119, %108 : vector<8x32xf32>
    %123 = arith.mulf %118, %120 : vector<8x32xf32>
    %124 = arith.addf %122, %123 : vector<8x32xf32>
    %125 = math.tanh %124 : vector<8x32xf32>
    %126 = arith.mulf %121, %125 : vector<8x32xf32>
    %127 = vector.extract_strided_slice %15 {offsets = [48, 0], sizes = [8, 128], strides = [1, 1]} : vector<64x128xf32> to vector<8x128xf32>
    %cst_22 = arith.constant dense<0.000000e+00> : vector<8x128xf32>
    %128 = tpu.matmul %126, %16, %cst_22 {dimension_numbers = #tpu.dot_dimension_numbers<[1], [0], [0], [1], [0, 0, 1, 1], [], []>} : vector<8x32xf32>, vector<32x128xf32>, vector<8x128xf32> -> vector<8x128xf32>
    %129 = arith.addf %127, %128 : vector<8x128xf32>
    %130 = arith.mulf %129, %25 : vector<8x128xf32>
    %131 = math.tanh %130 : vector<8x128xf32>
    %132 = arith.mulf %131, %25 : vector<8x128xf32>
    %133 = arith.addf %132, %28 : vector<8x128xf32>
    %134 = vector.extract_strided_slice %133 {offsets = [0, 0], sizes = [8, 32], strides = [1, 1]} : vector<8x128xf32> to vector<8x32xf32>
    %135 = vector.extract_strided_slice %133 {offsets = [0, 32], sizes = [8, 32], strides = [1, 1]} : vector<8x128xf32> to vector<8x32xf32>
    %136 = vector.extract_strided_slice %133 {offsets = [0, 64], sizes = [8, 32], strides = [1, 1]} : vector<8x128xf32> to vector<8x32xf32>
    %137 = vector.extract_strided_slice %133 {offsets = [0, 96], sizes = [8, 32], strides = [1, 1]} : vector<8x128xf32> to vector<8x32xf32>
    %138 = arith.mulf %135, %124 : vector<8x32xf32>
    %139 = arith.mulf %134, %136 : vector<8x32xf32>
    %140 = arith.addf %138, %139 : vector<8x32xf32>
    %141 = math.tanh %140 : vector<8x32xf32>
    %142 = arith.mulf %137, %141 : vector<8x32xf32>
    %143 = vector.extract_strided_slice %15 {offsets = [56, 0], sizes = [8, 128], strides = [1, 1]} : vector<64x128xf32> to vector<8x128xf32>
    %cst_23 = arith.constant dense<0.000000e+00> : vector<8x128xf32>
    %144 = tpu.matmul %142, %16, %cst_23 {dimension_numbers = #tpu.dot_dimension_numbers<[1], [0], [0], [1], [0, 0, 1, 1], [], []>} : vector<8x32xf32>, vector<32x128xf32>, vector<8x128xf32> -> vector<8x128xf32>
    %145 = arith.addf %143, %144 : vector<8x128xf32>
    %146 = arith.mulf %145, %25 : vector<8x128xf32>
    %147 = math.tanh %146 : vector<8x128xf32>
    %148 = arith.mulf %147, %25 : vector<8x128xf32>
    %149 = arith.addf %148, %28 : vector<8x128xf32>
    %150 = vector.extract_strided_slice %149 {offsets = [0, 0], sizes = [8, 32], strides = [1, 1]} : vector<8x128xf32> to vector<8x32xf32>
    %151 = vector.extract_strided_slice %149 {offsets = [0, 32], sizes = [8, 32], strides = [1, 1]} : vector<8x128xf32> to vector<8x32xf32>
    %152 = vector.extract_strided_slice %149 {offsets = [0, 64], sizes = [8, 32], strides = [1, 1]} : vector<8x128xf32> to vector<8x32xf32>
    %153 = vector.extract_strided_slice %149 {offsets = [0, 96], sizes = [8, 32], strides = [1, 1]} : vector<8x128xf32> to vector<8x32xf32>
    %154 = arith.mulf %151, %140 : vector<8x32xf32>
    %155 = arith.mulf %150, %152 : vector<8x32xf32>
    %156 = arith.addf %154, %155 : vector<8x32xf32>
    %157 = math.tanh %156 : vector<8x32xf32>
    %158 = arith.mulf %153, %157 : vector<8x32xf32>
    %c65 = arith.constant 65 : index
    %c0_24 = arith.constant 0 : index
    %159 = vector.load %arg1[%c65, %c0_24] : memref<66x128xf32, #tpu.memory_space<vmem>>, vector<1x32xf32>
    %160 = vector.broadcast %159 : vector<1x32xf32> to vector<8x32xf32>
    %161 = arith.mulf %158, %160 : vector<8x32xf32>
    %cst_25 = arith.constant dense<0.000000e+00> : vector<8xf32>
    %162 = vector.multi_reduction <add>, %161, %cst_25 [1] : vector<8x32xf32> to vector<8xf32>
    %163 = vector.shape_cast %162 : vector<8xf32> to vector<8x1xf32>
    %164 = vector.broadcast %2 : vector<1x1xf32> to vector<8x1xf32>
    %165 = arith.addf %163, %164 : vector<8x1xf32>
    %c0_26 = arith.constant 0 : index
    %c0_27 = arith.constant 0 : index
    %166 = vector.load %arg3[%c0_26, %c0_27] : memref<8x1xf32, #tpu.memory_space<vmem>>, vector<8x1xf32>
    tpu.vector_store %arg3[%c0_26, %c0_27], %165 {strides = array<i32>} : memref<8x1xf32, #tpu.memory_space<vmem>>, vector<8x1xf32>,
    return
  }
}

</mosaic_0001>

<llo_original>
// kernel: tpu_custom_call.1
$region0: #{tpu_custom_call.1}
  #allocation0 [shape = 'u32[]', space=smem, size = 0x4, offset = 0x4, fixed_abs, tag = 'smem constant byte address 0x4 - core index']
  #allocation1 [shape = 'u32[72,128]{1,0:T(1,128)}', space=vmem, size = 0x9000, scoped, tag = 'internal scratch']
  %s0 = inlined_call_operand.vmem [shape: f32[64,1], index: 0, kind: input, shape index: {}]
  %s1 = inlined_call_operand.hbm [shape: f32[66,128], index: 1, kind: input, shape index: {}]
  %s2 = inlined_call_operand.vmem [shape: f32[8,128], index: 2, kind: input, shape index: {}]
  %s3 = inlined_call_operand.vmem [shape: f32[8,1], index: 3, kind: output, shape index: {}]
  %s4 = sld [smem:[#allocation0]]
  $region26: #{tpu_custom_call.1} parent=0
    _
  %s6 = ssub.s32 1, %s4
  %s7 = scalar_select 0, %s6, %s4
  $region1: #{tpu_custom_call.1} parent=0
    #allocation2 [shape = 'u8[36864]{0}', space=vmem, size = 0x9000, scoped, tag = 'input window, operand 1, single buffered']
    #allocation3 [shape = 's32[1]{0}', space=sflag, size = 0x4, scoped, tag = 'scoped memory for tpu_custom_call.1']
    %8 = vsyncpa [#allocation3], 0
    // Predicated region
    $region2: #{tpu_custom_call.1} parent=1 // pred_check
      _
    $region3: #{tpu_custom_call.1} parent=1 // pred_check_branch
      %10 = sbr.rel (0) target = $region5
    $region4: #{tpu_custom_call.1} parent=1 // pred_region
      _
    $region5: #{tpu_custom_call.1} parent=1 // pred_fallthru
      _
    // Predicated region
    $region6: #{tpu_custom_call.1} parent=1 // pred_check
      _
    $region7: #{tpu_custom_call.1} parent=1 // pred_check_branch
      %12 = sbr.rel (0) target = $region9
    $region8: #{tpu_custom_call.1} parent=1 // pred_region
      %14 = vsyncadd [#allocation3], 0
      %s15 = sshll.u32 %s1, 4
      %s16 = int_to_ptr.hbm [resolvable:$true] %s15
      %s17 = sshll.u32 [#allocation2], 4
      %s18 = int_to_ptr.vmem [resolvable:$true] %s17
      %23 = dma.hbm_to_vmem [thread:$0]  %s16, 1152, %s18, [#allocation3], 128, 128, 8
    $region9: #{tpu_custom_call.1} parent=1 // pred_fallthru
      _
    // Predicated region
    $region10: #{tpu_custom_call.1} parent=1 // pred_check
      _
    $region11: #{tpu_custom_call.1} parent=1 // pred_check_branch
      %25 = sbr.rel (0) target = $region13
    $region12: #{tpu_custom_call.1} parent=1 // pred_region
      _
    $region13: #{tpu_custom_call.1} parent=1 // pred_fallthru
      _
    // Predicated region
    $region14: #{tpu_custom_call.1} parent=1 // pred_check
      _
    $region15: #{tpu_custom_call.1} parent=1 // pred_check_branch
      %27 = sbr.rel (0) target = $region17
    $region16: #{tpu_custom_call.1} parent=1 // pred_region
      %29 = dma.done [#allocation3], 1152
    $region17: #{tpu_custom_call.1} parent=1 // pred_fallthru
      _
    %v30 = vld [vmem:[%s2] sm:$0x1]
    %v31 = vld [vmem:[%s2 + $0x1] sm:$0x1]
    %v32 = vld [vmem:[%s2 + $0x2] sm:$0x1]
    %v33 = vld [vmem:[%s0] sm:$0xff]
    %v34 = vld [vmem:[%s0 + $0x8] sm:$0xff]
    %v35 = vld [vmem:[%s0 + $0x10] sm:$0xff]
    %v36 = vld [vmem:[%s0 + $0x18] sm:$0xff]
    %v37 = vld [vmem:[%s0 + $0x20] sm:$0xff]
    %v38 = vld [vmem:[%s0 + $0x28] sm:$0xff]
    %v39 = vld [vmem:[%s0 + $0x30] sm:$0xff]
    %v40 = vld [vmem:[%s0 + $0x38] sm:$0xff]
    %v41 = vld [vmem:[#allocation2 + $0x40] sm:$0x1]
    %43 = vset.pattern.permute.xlu0 0
    %44 = vperm.xlu0 %43, %v33
    %v45 = vpop.permute.xlu0 %44
    %48 = vset.pattern.permute.xlu0 0
    %49 = vperm.xlu0 %48, %v34
    %v50 = vpop.permute.xlu0 %49
    %53 = vset.pattern.permute.xlu0 0
    %54 = vperm.xlu0 %53, %v35
    %v55 = vpop.permute.xlu0 %54
    %58 = vset.pattern.permute.xlu0 0
    %59 = vperm.xlu0 %58, %v36
    %v60 = vpop.permute.xlu0 %59
    %63 = vset.pattern.permute.xlu0 0
    %64 = vperm.xlu0 %63, %v37
    %v65 = vpop.permute.xlu0 %64
    %68 = vset.pattern.permute.xlu0 0
    %69 = vperm.xlu0 %68, %v38
    %v70 = vpop.permute.xlu0 %69
    %73 = vset.pattern.permute.xlu0 0
    %74 = vperm.xlu0 %73, %v39
    %v75 = vpop.permute.xlu0 %74
    %78 = vset.pattern.permute.xlu0 0
    %79 = vperm.xlu0 %78, %v40
    %v80 = vpop.permute.xlu0 %79
    %v82 = vperm.slane %v41, 0
    %v83 = vmul.f32 %v45, %v82
    %v84 = vmul.f32 %v50, %v82
    %v85 = vmul.f32 %v55, %v82
    %v86 = vmul.f32 %v60, %v82
    %v87 = vmul.f32 %v65, %v82
    %v88 = vmul.f32 %v70, %v82
    %v89 = vmul.f32 %v75, %v82
    %v90 = vmul.f32 %v80, %v82
    %v91 = vperm.slane %v30, 0
    %v92 = vadd.f32 %v83, %v91
    %v93 = vadd.f32 %v84, %v91
    %v94 = vadd.f32 %v85, %v91
    %v95 = vadd.f32 %v86, %v91
    %v96 = vadd.f32 %v87, %v91
    %v97 = vadd.f32 %v88, %v91
    %v98 = vadd.f32 %v89, %v91
    %v99 = vadd.f32 %v90, %v91
    %v100 = vmax.f32 %v92, 0.0
    %v101 = vmax.f32 %v93, 0.0
    %v102 = vmax.f32 %v94, 0.0
    %v103 = vmax.f32 %v95, 0.0
    %v104 = vmax.f32 %v96, 0.0
    %v105 = vmax.f32 %v97, 0.0
    %v106 = vmax.f32 %v98, 0.0
    %v107 = vmax.f32 %v99, 0.0
    %v108 = vld [vmem:[#allocation2] sm:$0xff]
    %v109 = vld [vmem:[#allocation2 + $0x8] sm:$0xff]
    %v110 = vld [vmem:[#allocation2 + $0x10] sm:$0xff]
    %v111 = vld [vmem:[#allocation2 + $0x18] sm:$0xff]
    %v112 = vperm.slane %v31, 0
    %vm113 = vcmask 261120
    %v115 = vsel %vm113, %v100, 0
    %v118 = vsel %vm113, %v101, 0
    %v121 = vsel %vm113, %v102, 0
    %v124 = vsel %vm113, %v103, 0
    %v127 = vsel %vm113, %v104, 0
    %v130 = vsel %vm113, %v105, 0
    %v133 = vsel %vm113, %v106, 0
    %v136 = vsel %vm113, %v107, 0
    %138 = vmatpush.msra.mxu0 0.0
    %139 = vmatpush.msra.mxu0 0.0
    %140 = vmatpush.msra.mxu0 0.0
    %141 = vmatpush.msra.mxu0 0.0
    %142 = vmatpush.msra.mxu0 0.0
    %143 = vmatpush.msra.mxu0 0.0
    %144 = vmatpush.msra.mxu0 0.0
    %145 = vmatpush.msra.mxu0 0.0
    %146 = vmatpush.msra.mxu0 0.0
    %147 = vmatpush.msra.mxu0 0.0
    %148 = vmatpush.msra.mxu0 0.0
    %149 = vmatpush.msra.mxu0 0.0
    %150 = vmatpush.msra.mxu0 %v111
    %151 = vmatpush.msra.mxu0 %v110
    %152 = vmatpush.msra.mxu0 %v109
    %153 = vmatpush.msra.mxu0 %v108
    %154 = vmatmul.f32.gmra.mxu0 %v115
    %v155 = vpop.f32.mrf.mxu0
    %v156 = vadd.f32 %v112, %v155
    %157 = vmatmul.f32.gmra.mxu0 %v118
    %v158 = vpop.f32.mrf.mxu0
    %v159 = vadd.f32 %v112, %v158
    %160 = vmatmul.f32.gmra.mxu0 %v121
    %v161 = vpop.f32.mrf.mxu0
    %v162 = vadd.f32 %v112, %v161
    %163 = vmatmul.f32.gmra.mxu0 %v124
    %v164 = vpop.f32.mrf.mxu0
    %v165 = vadd.f32 %v112, %v164
    %166 = vmatmul.f32.gmra.mxu0 %v127
    %v167 = vpop.f32.mrf.mxu0
    %v168 = vadd.f32 %v112, %v167
    %169 = vmatmul.f32.gmra.mxu0 %v130
    %v170 = vpop.f32.mrf.mxu0
    %v171 = vadd.f32 %v112, %v170
    %172 = vmatmul.f32.gmra.mxu0 %v133
    %v173 = vpop.f32.mrf.mxu0
    %v174 = vadd.f32 %v112, %v173
    %175 = vmatmul.f32.gmra.mxu0 %v136
    %v176 = vpop.f32.mrf.mxu0
    %v177 = vadd.f32 %v112, %v176
    %178 = vdwg.mxu0
    %v179 = vld [vmem:[#allocation2 + $0x20] sm:$0xff]
    %v180 = vld [vmem:[#allocation2 + $0x28] sm:$0xff]
    %v181 = vld [vmem:[#allocation2 + $0x30] sm:$0xff]
    %v182 = vld [vmem:[#allocation2 + $0x38] sm:$0xff]
    %v183 = vlaneseq
    %v184 = vand.u32 %v183, 127
    %vm185 = vcmp.ge.s32.totalorder %v184, 64
    %vm186 = vcmp.lt.s32.totalorder %v184, 96
    %vm187 = vmand %vm185, %vm186
    %v188 = vsel %vm187, 1.0, 0.5
    %v189 = vsel %vm187, 0.0, 0.5
    %v191 = vsel %vm113, 0.0, 0
    %193 = vmatpush.msra.mxu0 0.0
    %194 = vmatpush.msra.mxu0 0.0
    %195 = vmatpush.msra.mxu0 0.0
    %196 = vmatpush.msra.mxu0 0.0
    %197 = vmatpush.msra.mxu0 0.0
    %198 = vmatpush.msra.mxu0 0.0
    %199 = vmatpush.msra.mxu0 0.0
    %200 = vmatpush.msra.mxu0 0.0
    %201 = vmatpush.msra.mxu0 0.0
    %202 = vmatpush.msra.mxu0 0.0
    %203 = vmatpush.msra.mxu0 0.0
    %204 = vmatpush.msra.mxu0 0.0
    %205 = vmatpush.msra.mxu0 %v182
    %206 = vmatpush.msra.mxu0 %v181
    %207 = vmatpush.msra.mxu0 %v180
    %208 = vmatpush.msra.mxu0 %v179
    %209 = vmatmul.f32.gmra.mxu0 %v191
    %v210 = vpop.f32.mrf.mxu0
    %v211 = vadd.f32 0.0, %v210
    %212 = vdwg.mxu0
    %v213 = vadd.f32 %v156, %v211
    %v214 = vmul.f32 %v213, %v188
    %v215 = vtanh.pop %v214
    %v216 = vmul.f32 %v215, %v188
    %v217 = vadd.f32 %v216, %v189
    %v218 = vmul.f32 %v217, 0.0
    %220 = vrot.lane.b32.xlu0 %v217, 64
    %v221 = vpop.permute.xlu0 %220
    %v223 = vmul.f32 %v217, %v221
    %225 = vrot.lane.b32.xlu0 %v223, 32
    %v226 = vpop.permute.xlu0 %225
    %v228 = vadd.f32 %v218, %v226
    %v229 = vtanh.pop %v228
    %231 = vrot.lane.b32.xlu0 %v229, 64
    %v232 = vpop.permute.xlu0 %231
    %v234 = vmul.f32 %v217, %v232
    %236 = vrot.lane.b32.xlu0 %v234, 32
    %v237 = vpop.permute.xlu0 %236
    %v238 = vsel %vm113, %v237, 0
    %240 = vmatpush.msra.mxu0 0.0
    %241 = vmatpush.msra.mxu0 0.0
    %242 = vmatpush.msra.mxu0 0.0
    %243 = vmatpush.msra.mxu0 0.0
    %244 = vmatpush.msra.mxu0 0.0
    %245 = vmatpush.msra.mxu0 0.0
    %246 = vmatpush.msra.mxu0 0.0
    %247 = vmatpush.msra.mxu0 0.0
    %248 = vmatpush.msra.mxu0 0.0
    %249 = vmatpush.msra.mxu0 0.0
    %250 = vmatpush.msra.mxu0 0.0
    %251 = vmatpush.msra.mxu0 0.0
    %252 = vmatpush.msra.mxu0 %v182
    %253 = vmatpush.msra.mxu0 %v181
    %254 = vmatpush.msra.mxu0 %v180
    %255 = vmatpush.msra.mxu0 %v179
    %256 = vmatmul.f32.gmra.mxu0 %v238
    %v257 = vpop.f32.mrf.mxu0
    %v258 = vadd.f32 0.0, %v257
    %259 = vdwg.mxu0
    %v260 = vadd.f32 %v159, %v258
    %v261 = vmul.f32 %v260, %v188
    %v262 = vtanh.pop %v261
    %v263 = vmul.f32 %v262, %v188
    %v264 = vadd.f32 %v263, %v189
    %v265 = vmul.f32 %v264, %v228
    %267 = vrot.lane.b32.xlu0 %v264, 64
    %v268 = vpop.permute.xlu0 %267
    %v270 = vmul.f32 %v264, %v268
    %272 = vrot.lane.b32.xlu0 %v270, 32
    %v273 = vpop.permute.xlu0 %272
    %v275 = vadd.f32 %v265, %v273
    %v276 = vtanh.pop %v275
    %278 = vrot.lane.b32.xlu0 %v276, 64
    %v279 = vpop.permute.xlu0 %278
    %v281 = vmul.f32 %v264, %v279
    %283 = vrot.lane.b32.xlu0 %v281, 32
    %v284 = vpop.permute.xlu0 %283
    %v285 = vsel %vm113, %v284, 0
    %287 = vmatpush.msra.mxu0 0.0
    %288 = vmatpush.msra.mxu0 0.0
    %289 = vmatpush.msra.mxu0 0.0
    %290 = vmatpush.msra.mxu0 0.0
    %291 = vmatpush.msra.mxu0 0.0
    %292 = vmatpush.msra.mxu0 0.0
    %293 = vmatpush.msra.mxu0 0.0
    %294 = vmatpush.msra.mxu0 0.0
    %295 = vmatpush.msra.mxu0 0.0
    %296 = vmatpush.msra.mxu0 0.0
    %297 = vmatpush.msra.mxu0 0.0
    %298 = vmatpush.msra.mxu0 0.0
    %299 = vmatpush.msra.mxu0 %v182
    %300 = vmatpush.msra.mxu0 %v181
    %301 = vmatpush.msra.mxu0 %v180
    %302 = vmatpush.msra.mxu0 %v179
    %303 = vmatmul.f32.gmra.mxu0 %v285
    %v304 = vpop.f32.mrf.mxu0
    %v305 = vadd.f32 0.0, %v304
    %306 = vdwg.mxu0
    %v307 = vadd.f32 %v162, %v305
    %v308 = vmul.f32 %v307, %v188
    %v309 = vtanh.pop %v308
    %v310 = vmul.f32 %v309, %v188
    %v311 = vadd.f32 %v310, %v189
    %v312 = vmul.f32 %v311, %v275
    %314 = vrot.lane.b32.xlu0 %v311, 64
    %v315 = vpop.permute.xlu0 %314
    %v317 = vmul.f32 %v311, %v315
    %319 = vrot.lane.b32.xlu0 %v317, 32
    %v320 = vpop.permute.xlu0 %319
    %v322 = vadd.f32 %v312, %v320
    %v323 = vtanh.pop %v322
    %325 = vrot.lane.b32.xlu0 %v323, 64
    %v326 = vpop.permute.xlu0 %325
    %v328 = vmul.f32 %v311, %v326
    %330 = vrot.lane.b32.xlu0 %v328, 32
    %v331 = vpop.permute.xlu0 %330
    %v332 = vsel %vm113, %v331, 0
    %334 = vmatpush.msra.mxu0 0.0
    %335 = vmatpush.msra.mxu0 0.0
    %336 = vmatpush.msra.mxu0 0.0
    %337 = vmatpush.msra.mxu0 0.0
    %338 = vmatpush.msra.mxu0 0.0
    %339 = vmatpush.msra.mxu0 0.0
    %340 = vmatpush.msra.mxu0 0.0
    %341 = vmatpush.msra.mxu0 0.0
    %342 = vmatpush.msra.mxu0 0.0
    %343 = vmatpush.msra.mxu0 0.0
    %344 = vmatpush.msra.mxu0 0.0
    %345 = vmatpush.msra.mxu0 0.0
    %346 = vmatpush.msra.mxu0 %v182
    %347 = vmatpush.msra.mxu0 %v181
    %348 = vmatpush.msra.mxu0 %v180
    %349 = vmatpush.msra.mxu0 %v179
    %350 = vmatmul.f32.gmra.mxu0 %v332
    %v351 = vpop.f32.mrf.mxu0
    %v352 = vadd.f32 0.0, %v351
    %353 = vdwg.mxu0
    %v354 = vadd.f32 %v165, %v352
    %v355 = vmul.f32 %v354, %v188
    %v356 = vtanh.pop %v355
    %v357 = vmul.f32 %v356, %v188
    %v358 = vadd.f32 %v357, %v189
    %v359 = vmul.f32 %v358, %v322
    %361 = vrot.lane.b32.xlu0 %v358, 64
    %v362 = vpop.permute.xlu0 %361
    %v364 = vmul.f32 %v358, %v362
    %366 = vrot.lane.b32.xlu0 %v364, 32
    %v367 = vpop.permute.xlu0 %366
    %v369 = vadd.f32 %v359, %v367
    %v370 = vtanh.pop %v369
    %372 = vrot.lane.b32.xlu0 %v370, 64
    %v373 = vpop.permute.xlu0 %372
    %v375 = vmul.f32 %v358, %v373
    %377 = vrot.lane.b32.xlu0 %v375, 32
    %v378 = vpop.permute.xlu0 %377
    %v379 = vsel %vm113, %v378, 0
    %381 = vmatpush.msra.mxu0 0.0
    %382 = vmatpush.msra.mxu0 0.0
    %383 = vmatpush.msra.mxu0 0.0
    %384 = vmatpush.msra.mxu0 0.0
    %385 = vmatpush.msra.mxu0 0.0
    %386 = vmatpush.msra.mxu0 0.0
    %387 = vmatpush.msra.mxu0 0.0
    %388 = vmatpush.msra.mxu0 0.0
    %389 = vmatpush.msra.mxu0 0.0
    %390 = vmatpush.msra.mxu0 0.0
    %391 = vmatpush.msra.mxu0 0.0
    %392 = vmatpush.msra.mxu0 0.0
    %393 = vmatpush.msra.mxu0 %v182
    %394 = vmatpush.msra.mxu0 %v181
    %395 = vmatpush.msra.mxu0 %v180
    %396 = vmatpush.msra.mxu0 %v179
    %397 = vmatmul.f32.gmra.mxu0 %v379
    %v398 = vpop.f32.mrf.mxu0
    %v399 = vadd.f32 0.0, %v398
    %400 = vdwg.mxu0
    %v401 = vadd.f32 %v168, %v399
    %v402 = vmul.f32 %v401, %v188
    %v403 = vtanh.pop %v402
    %v404 = vmul.f32 %v403, %v188
    %v405 = vadd.f32 %v404, %v189
    %v406 = vmul.f32 %v405, %v369
    %408 = vrot.lane.b32.xlu0 %v405, 64
    %v409 = vpop.permute.xlu0 %408
    %v411 = vmul.f32 %v405, %v409
    %413 = vrot.lane.b32.xlu0 %v411, 32
    %v414 = vpop.permute.xlu0 %413
    %v416 = vadd.f32 %v406, %v414
    %v417 = vtanh.pop %v416
    %419 = vrot.lane.b32.xlu0 %v417, 64
    %v420 = vpop.permute.xlu0 %419
    %v422 = vmul.f32 %v405, %v420
    %424 = vrot.lane.b32.xlu0 %v422, 32
    %v425 = vpop.permute.xlu0 %424
    %v426 = vsel %vm113, %v425, 0
    %428 = vmatpush.msra.mxu0 0.0
    %429 = vmatpush.msra.mxu0 0.0
    %430 = vmatpush.msra.mxu0 0.0
    %431 = vmatpush.msra.mxu0 0.0
    %432 = vmatpush.msra.mxu0 0.0
    %433 = vmatpush.msra.mxu0 0.0
    %434 = vmatpush.msra.mxu0 0.0
    %435 = vmatpush.msra.mxu0 0.0
    %436 = vmatpush.msra.mxu0 0.0
    %437 = vmatpush.msra.mxu0 0.0
    %438 = vmatpush.msra.mxu0 0.0
    %439 = vmatpush.msra.mxu0 0.0
    %440 = vmatpush.msra.mxu0 %v182
    %441 = vmatpush.msra.mxu0 %v181
    %442 = vmatpush.msra.mxu0 %v180
    %443 = vmatpush.msra.mxu0 %v179
    %444 = vmatmul.f32.gmra.mxu0 %v426
    %v445 = vpop.f32.mrf.mxu0
    %v446 = vadd.f32 0.0, %v445
    %447 = vdwg.mxu0
    %v448 = vadd.f32 %v171, %v446
    %v449 = vmul.f32 %v448, %v188
    %v450 = vtanh.pop %v449
    %v451 = vmul.f32 %v450, %v188
    %v452 = vadd.f32 %v451, %v189
    %v453 = vmul.f32 %v452, %v416
    %455 = vrot.lane.b32.xlu0 %v452, 64
    %v456 = vpop.permute.xlu0 %455
    %v458 = vmul.f32 %v452, %v456
    %460 = vrot.lane.b32.xlu0 %v458, 32
    %v461 = vpop.permute.xlu0 %460
    %v463 = vadd.f32 %v453, %v461
    %v464 = vtanh.pop %v463
    %466 = vrot.lane.b32.xlu0 %v464, 64
    %v467 = vpop.permute.xlu0 %466
    %v469 = vmul.f32 %v452, %v467
    %471 = vrot.lane.b32.xlu0 %v469, 32
    %v472 = vpop.permute.xlu0 %471
    %v473 = vsel %vm113, %v472, 0
    %475 = vmatpush.msra.mxu0 0.0
    %476 = vmatpush.msra.mxu0 0.0
    %477 = vmatpush.msra.mxu0 0.0
    %478 = vmatpush.msra.mxu0 0.0
    %479 = vmatpush.msra.mxu0 0.0
    %480 = vmatpush.msra.mxu0 0.0
    %481 = vmatpush.msra.mxu0 0.0
    %482 = vmatpush.msra.mxu0 0.0
    %483 = vmatpush.msra.mxu0 0.0
    %484 = vmatpush.msra.mxu0 0.0
    %485 = vmatpush.msra.mxu0 0.0
    %486 = vmatpush.msra.mxu0 0.0
    %487 = vmatpush.msra.mxu0 %v182
    %488 = vmatpush.msra.mxu0 %v181
    %489 = vmatpush.msra.mxu0 %v180
    %490 = vmatpush.msra.mxu0 %v179
    %491 = vmatmul.f32.gmra.mxu0 %v473
    %v492 = vpop.f32.mrf.mxu0
    %v493 = vadd.f32 0.0, %v492
    %494 = vdwg.mxu0
    %v495 = vadd.f32 %v174, %v493
    %v496 = vmul.f32 %v495, %v188
    %v497 = vtanh.pop %v496
    %v498 = vmul.f32 %v497, %v188
    %v499 = vadd.f32 %v498, %v189
    %v500 = vmul.f32 %v499, %v463
    %502 = vrot.lane.b32.xlu0 %v499, 64
    %v503 = vpop.permute.xlu0 %502
    %v505 = vmul.f32 %v499, %v503
    %507 = vrot.lane.b32.xlu0 %v505, 32
    %v508 = vpop.permute.xlu0 %507
    %v510 = vadd.f32 %v500, %v508
    %v511 = vtanh.pop %v510
    %513 = vrot.lane.b32.xlu0 %v511, 64
    %v514 = vpop.permute.xlu0 %513
    %v516 = vmul.f32 %v499, %v514
    %518 = vrot.lane.b32.xlu0 %v516, 32
    %v519 = vpop.permute.xlu0 %518
    %v520 = vsel %vm113, %v519, 0
    %522 = vmatpush.msra.mxu0 0.0
    %523 = vmatpush.msra.mxu0 0.0
    %524 = vmatpush.msra.mxu0 0.0
    %525 = vmatpush.msra.mxu0 0.0
    %526 = vmatpush.msra.mxu0 0.0
    %527 = vmatpush.msra.mxu0 0.0
    %528 = vmatpush.msra.mxu0 0.0
    %529 = vmatpush.msra.mxu0 0.0
    %530 = vmatpush.msra.mxu0 0.0
    %531 = vmatpush.msra.mxu0 0.0
    %532 = vmatpush.msra.mxu0 0.0
    %533 = vmatpush.msra.mxu0 0.0
    %534 = vmatpush.msra.mxu0 %v182
    %535 = vmatpush.msra.mxu0 %v181
    %536 = vmatpush.msra.mxu0 %v180
    %537 = vmatpush.msra.mxu0 %v179
    %538 = vmatmul.f32.gmra.mxu0 %v520
    %v539 = vpop.f32.mrf.mxu0
    %v540 = vadd.f32 0.0, %v539
    %541 = vdwg.mxu0
    %v542 = vadd.f32 %v177, %v540
    %v543 = vmul.f32 %v542, %v188
    %v544 = vtanh.pop %v543
    %v545 = vmul.f32 %v544, %v188
    %v546 = vadd.f32 %v545, %v189
    %v547 = vmul.f32 %v546, %v510
    %549 = vrot.lane.b32.xlu0 %v546, 64
    %v550 = vpop.permute.xlu0 %549
    %v552 = vmul.f32 %v546, %v550
    %554 = vrot.lane.b32.xlu0 %v552, 32
    %v555 = vpop.permute.xlu0 %554
    %v557 = vadd.f32 %v547, %v555
    %v558 = vtanh.pop %v557
    %560 = vrot.lane.b32.xlu0 %v558, 64
    %v561 = vpop.permute.xlu0 %560
    %v563 = vmul.f32 %v546, %v561
    %v564 = vld [vmem:[#allocation2 + $0x41] sm:$0x1]
    %v565 = vperm.slane %v564, 0
    %567 = vrot.lane.b32.xlu0 %v565, 96
    %v568 = vpop.permute.xlu0 %567
    %v570 = vmul.f32 %v563, %v568
    %572 = vrot.lane.b32.xlu0 %v570, 32
    %v573 = vpop.permute.xlu0 %572
    %v575 = vsel %vm113, %v573, 0.0
    %576 = vadd.xlane.f32.xlu0 %v575
    %v577 = vpop.xlane.xlu0 %576
    %v578 = vperm.slane %v32, 0
    %v579 = vadd.f32 %v577, %v578
    %vm580 = vcmask 7168
    %581 = vst.msk [vmem:[%s3] sm:$0xff] %vm580, %v579
    // Predicated region
    $region18: #{tpu_custom_call.1} parent=1 // pred_check
      _
    $region19: #{tpu_custom_call.1} parent=1 // pred_check_branch
      %583 = sbr.rel (0) target = $region21
    $region20: #{tpu_custom_call.1} parent=1 // pred_region
      _
    $region21: #{tpu_custom_call.1} parent=1 // pred_fallthru
      _
    // Predicated region
    $region22: #{tpu_custom_call.1} parent=1 // pred_check
      _
    $region23: #{tpu_custom_call.1} parent=1 // pred_check_branch
      %585 = sbr.rel (0) target = $region25
    $region24: #{tpu_custom_call.1} parent=1 // pred_region
      _
    $region25: #{tpu_custom_call.1} parent=1 // pred_fallthru
      _
    %586 = vsyncpa [#allocation3], 1

</llo_original>
